<compile_context>
chip_gen: v7x
topology: tpu7x:2x2x1
jax: 0.10.0
libtpu: 0.0.40
codegen_flags: <defaults>
</compile_context>

<pallas_src>
import jax
import jax.numpy as jnp
from jax.experimental import pallas as pl
from jax.experimental.pallas import tpu as pltpu

NEG_INF = -1e30


def bidaf_attention_kernel(c_ref, q_ref, cmask_ref, qmask_ref, w_ref, bias_ref, out_ref):
    f32 = jnp.float32

    c = c_ref[...]            # (bt, Lc, H) f32
    q = q_ref[...]            # (bt, Lq, H) f32
    cm = cmask_ref[...]       # (bt, 1, Lc) f32 {0,1}
    qm = qmask_ref[...]       # (bt, 1, Lq) f32 {0,1}
    wc = w_ref[0:1, :]        # (1, H)  c_lin_project
    wq = w_ref[1:2, :]        # (1, H)  q_lin_project
    wcq = w_ref[2:3, :]       # (1, H)  cq_lin_project
    bias = bias_ref[0]        # scalar from SMEM

    # TODO(synk): nn.Dropout(p=drop_prob) inside get_similarity_matrix is
    # training-only; at inference it is identity and is therefore omitted.

    # --- similarity matrix ---------------------------------------------------
    # rank-1 terms on the VPU (lane reductions); the MXU only sees real matmuls.
    s0 = jnp.sum(c * wc, axis=-1, keepdims=True)                          # (bt, Lc, 1)
    s1t = jnp.swapaxes(jnp.sum(q * wq, axis=-1, keepdims=True), 1, 2)     # (bt, 1, Lq)

    # bilinear term: fold wcq into the much shorter q side (Lq*H vs Lc*H scaling).
    q_scaled = q * wcq                                                    # (bt, Lq, H)
    s2 = jnp.einsum("bcd,bqd->bcq", c, q_scaled,
                    preferred_element_type=f32)                           # (bt, Lc, Lq)

    s = s2 + s0 + s1t + bias                                              # (bt, Lc, Lq)

    # additive masks: one VPU add on the big tile instead of compare+select.
    add_qm = (1.0 - qm) * NEG_INF                                         # (bt, 1, Lq)
    add_cm = (1.0 - cm) * NEG_INF                                         # (bt, 1, Lc)

    # --- masked softmax over the query axis (torch dim=2) --------------------
    lq = s + add_qm
    eq = jnp.exp(lq - jnp.max(lq, axis=-1, keepdims=True))                # (bt, Lc, Lq)
    inv_lq = pl.reciprocal(jnp.sum(eq, axis=-1, keepdims=True), approx=True)   # (bt, Lc, 1)

    # --- masked softmax over the context axis (torch dim=1), computed on s^T
    #     so max/sum are lane reductions --------------------------------------
    sT = jnp.swapaxes(s, 1, 2)                                            # (bt, Lq, Lc)
    lc = sT + add_cm
    ec = jnp.exp(lc - jnp.max(lc, axis=-1, keepdims=True))                # (bt, Lq, Lc)
    inv_lc = pl.reciprocal(jnp.sum(ec, axis=-1, keepdims=True), approx=True)   # (bt, Lq, 1)

    # c2q = a @ q ; the 1/Z row scale is applied after the matmul.
    c2q = jnp.einsum("bcq,bqd->bcd", eq, q, preferred_element_type=f32) * inv_lq

    # q2c = a @ (b^T @ c) -- reassociated so the (Lc, Lc) intermediate never exists.
    btc = jnp.einsum("bqc,bcd->bqd", ec, c, preferred_element_type=f32) * inv_lc   # (bt, Lq, H)
    q2c = jnp.einsum("bcq,bqd->bcd", eq, btc, preferred_element_type=f32) * inv_lq

    # --- output [c | c2q | c*c2q | c*q2c] -------------------------------------
    H = c.shape[-1]
    if H % 128 == 0:
        # 128-aligned slices -> four unmasked lane-dense stores.
        out_ref[:, :, 0:H] = c
        out_ref[:, :, H:2 * H] = c2q
        out_ref[:, :, 2 * H:3 * H] = c * c2q
        out_ref[:, :, 3 * H:4 * H] = c * q2c
    else:
        # H not lane-aligned: assemble the full (bt, Lc, 4H) tile in registers
        # and issue one lane-dense store instead of four masked partial stores.
        out_ref[...] = jnp.concatenate([c, c2q, c * c2q, c * q2c], axis=-1)


def _largest_divisor_at_most(n, cap):
    cap = max(1, min(n, cap))
    for d in range(cap, 0, -1):
        if n % d == 0:
            return d
    return 1


def bidaf_attention(c, q, c_mask, q_mask, wc, wq, wcq, bias,
                    *, vmem_budget_bytes=8 * 1024 * 1024):
    """c:(B,Lc,H) q:(B,Lq,H) c_mask:(B,Lc) q_mask:(B,Lq); weights as in the torch module."""
    B, c_len, H = c.shape
    q_len = q.shape[1]

    cm = c_mask.astype(jnp.float32).reshape(B, 1, c_len)
    qm = q_mask.astype(jnp.float32).reshape(B, 1, q_len)

    # Merge the three projection vectors into one (8, H) tile -> one DMA per step.
    w = jnp.zeros((8, H), jnp.float32)
    w = w.at[0].set(wc.reshape(H).astype(jnp.float32))
    w = w.at[1].set(wq.reshape(H).astype(jnp.float32))
    w = w.at[2].set(wcq.reshape(H).astype(jnp.float32))
    bias1 = bias.reshape(1).astype(jnp.float32)

    # Batch tile: as many batch rows per grid step as the VMEM budget allows
    # (double-buffered f32 blocks). At the test size this collapses to one step.
    per_batch_bytes = 4 * 2 * (c_len * H + q_len * H + c_len + q_len + c_len * 4 * H)
    bt = _largest_divisor_at_most(B, max(1, vmem_budget_bytes // per_batch_bytes))

    flops = 2 * B * c_len * q_len * H * 3 + 4 * B * c_len * q_len
    transcendentals = 2 * B * c_len * q_len
    bytes_accessed = 4 * (5 * B * c_len * H + B * q_len * H
                          + B * (c_len + q_len) + 8 * H + 1)

    grid_spec = pltpu.PrefetchScalarGridSpec(
        num_scalar_prefetch=0,
        grid=(B // bt,),
        in_specs=[
            pl.BlockSpec((bt, c_len, H), lambda i: (i, 0, 0)),      # c
            pl.BlockSpec((bt, q_len, H), lambda i: (i, 0, 0)),      # q
            pl.BlockSpec((bt, 1, c_len), lambda i: (i, 0, 0)),      # c_mask row
            pl.BlockSpec((bt, 1, q_len), lambda i: (i, 0, 0)),      # q_mask row
            pl.BlockSpec((8, H), lambda i: (0, 0)),                 # packed weights
            pl.BlockSpec(memory_space=pltpu.MemorySpace.SMEM),      # bias scalar
        ],
        out_specs=pl.BlockSpec((bt, c_len, 4 * H), lambda i: (i, 0, 0)),
    )

    return pl.pallas_call(
        bidaf_attention_kernel,
        out_shape=jax.ShapeDtypeStruct((B, c_len, 4 * H), jnp.float32),
        grid_spec=grid_spec,
        compiler_params=pltpu.CompilerParams(dimension_semantics=("parallel",)),
        cost_estimate=pl.CostEstimate(flops=flops,
                                      transcendentals=transcendentals,
                                      bytes_accessed=bytes_accessed),
    )(c, q, cm, qm, w, bias1)


def bidaf_attention_ref(c, q, c_mask, q_mask, wc, wq, wcq, bias):
    """Pure-JAX f32 reference mirroring the PyTorch forward (eval mode)."""
    B, c_len, H = c.shape
    q_len = q.shape[1]
    s0 = jnp.matmul(c, wc)                                   # (B, Lc, 1)
    s1 = jnp.swapaxes(jnp.matmul(q, wq), 1, 2)               # (B, 1, Lq)
    s2 = jnp.matmul(c * wcq, jnp.swapaxes(q, 1, 2))          # (B, Lc, Lq)
    s = s0 + s1 + s2 + bias
    qm = q_mask.astype(jnp.float32).reshape(B, 1, q_len)
    cm = c_mask.astype(jnp.float32).reshape(B, c_len, 1)
    a = jax.nn.softmax(qm * s + (1 - qm) * NEG_INF, axis=2)
    b = jax.nn.softmax(cm * s + (1 - cm) * NEG_INF, axis=1)
    c2q = jnp.matmul(a, q)
    q2c = jnp.matmul(jnp.matmul(a, jnp.swapaxes(b, 1, 2)), c)
    return jnp.concatenate([c, c2q, c * c2q, c * q2c], axis=2)


def xavier_uniform(key, shape, fan_in, fan_out):
    lim = (6.0 / (fan_in + fan_out)) ** 0.5
    return jax.random.uniform(key, shape, jnp.float32, -lim, lim)


if __name__ == "__main__":
    B, c_len, q_len, H = 2, 16, 8, 32

    key = jax.random.PRNGKey(0)
    kc, kq, kwc, kwq, kwcq = jax.random.split(key, 5)

    c = jax.random.normal(kc, (B, c_len, H), dtype=jnp.float32)
    q = jax.random.normal(kq, (B, q_len, H), dtype=jnp.float32)

    # valid-length masks (1 = keep, 0 = pad)
    c_lens = jnp.array([16, 12])
    q_lens = jnp.array([8, 5])
    c_mask = (jnp.arange(c_len)[None, :] < c_lens[:, None]).astype(jnp.float32)
    q_mask = (jnp.arange(q_len)[None, :] < q_lens[:, None]).astype(jnp.float32)

    # deterministic parameter init (shapes from the torch module's __init__)
    wc = xavier_uniform(kwc, (H, 1), fan_in=1, fan_out=H)        # c_lin_project
    wq = xavier_uniform(kwq, (H, 1), fan_in=1, fan_out=H)        # q_lin_project
    wcq = xavier_uniform(kwcq, (1, 1, H), fan_in=H, fan_out=H)   # cq_lin_project
    bias = jnp.full((1,), 0.25, dtype=jnp.float32)

    out = bidaf_attention(c, q, c_mask, q_mask, wc, wq, wcq, bias)
    out = jax.block_until_ready(out)

    ref = bidaf_attention_ref(c, q, c_mask, q_mask, wc, wq, wcq, bias)
    assert out.shape == (B, c_len, 4 * H)
    # f32 matmuls throughout; only the approximate reciprocal in the softmax
    # denominators adds ~1e-3-level error in the attention weights.
    assert jnp.allclose(out, ref, atol=2e-2, rtol=2e-2)

    print("KERNEL_OK")
</pallas_src>

<mosaic_0001>
module attributes {stable_mosaic.version = 11 : i64} {
  func.func @bidaf_attention_kernel(%arg0: i32, %arg1: memref<2x16x32xf32, #tpu.memory_space<vmem>>, %arg2: memref<2x8x32xf32, #tpu.memory_space<vmem>>, %arg3: memref<2x1x16xf32, #tpu.memory_space<vmem>>, %arg4: memref<2x1x8xf32, #tpu.memory_space<vmem>>, %arg5: memref<8x32xf32, #tpu.memory_space<vmem>>, %arg6: memref<1xf32, #tpu.memory_space<smem>>, %arg7: memref<2x16x128xf32, #tpu.memory_space<vmem>>) attributes {dimension_semantics = [#tpu.dimension_semantics<parallel>], iteration_bounds = array<i64: 1>, scalar_prefetch = 0 : i64, scratch_operands = 0 : i64, tpu.core_type = #tpu.core_type<tc>, window_params = [{transform_indices = @transform_0, window_bounds = array<i64: 2, 16, 32>}, {transform_indices = @transform_1, window_bounds = array<i64: 2, 8, 32>}, {transform_indices = @transform_2, window_bounds = array<i64: 2, 1, 16>}, {transform_indices = @transform_3, window_bounds = array<i64: 2, 1, 8>}, {pipeline_mode = #tpu.pipeline_mode<synchronous>, transform_indices = @transform_4, window_bounds = array<i64: 8, 32>}, {transform_indices = @transform_5, window_bounds = array<i64: 1>}, {transform_indices = @transform_6, window_bounds = array<i64: 2, 16, 128>}]} {
    %c0 = arith.constant 0 : index
    %c0_0 = arith.constant 0 : index
    %c0_1 = arith.constant 0 : index
    %0 = vector.load %arg1[%c0, %c0_0, %c0_1] : memref<2x16x32xf32, #tpu.memory_space<vmem>>, vector<2x16x32xf32>
    %c0_2 = arith.constant 0 : index
    %c0_3 = arith.constant 0 : index
    %c0_4 = arith.constant 0 : index
    %1 = vector.load %arg2[%c0_2, %c0_3, %c0_4] : memref<2x8x32xf32, #tpu.memory_space<vmem>>, vector<2x8x32xf32>
    %c0_5 = arith.constant 0 : index
    %c0_6 = arith.constant 0 : index
    %c0_7 = arith.constant 0 : index
    %2 = vector.load %arg3[%c0_5, %c0_6, %c0_7] : memref<2x1x16xf32, #tpu.memory_space<vmem>>, vector<2x1x16xf32>
    %c0_8 = arith.constant 0 : index
    %c0_9 = arith.constant 0 : index
    %c0_10 = arith.constant 0 : index
    %3 = vector.load %arg4[%c0_8, %c0_9, %c0_10] : memref<2x1x8xf32, #tpu.memory_space<vmem>>, vector<2x1x8xf32>
    %c0_11 = arith.constant 0 : index
    %c0_12 = arith.constant 0 : index
    %4 = vector.load %arg5[%c0_11, %c0_12] : memref<8x32xf32, #tpu.memory_space<vmem>>, vector<1x32xf32>
    %c1 = arith.constant 1 : index
    %c0_13 = arith.constant 0 : index
    %5 = vector.load %arg5[%c1, %c0_13] : memref<8x32xf32, #tpu.memory_space<vmem>>, vector<1x32xf32>
    %c2 = arith.constant 2 : index
    %c0_14 = arith.constant 0 : index
    %6 = vector.load %arg5[%c2, %c0_14] : memref<8x32xf32, #tpu.memory_space<vmem>>, vector<1x32xf32>
    %c0_15 = arith.constant 0 : index
    %7 = memref.load %arg6[%c0_15] : memref<1xf32, #tpu.memory_space<smem>>
    %8 = vector.shape_cast %4 : vector<1x32xf32> to vector<1x1x32xf32>
    %9 = vector.broadcast %8 : vector<1x1x32xf32> to vector<2x16x32xf32>
    %10 = arith.mulf %0, %9 : vector<2x16x32xf32>
    %cst = arith.constant dense<0.000000e+00> : vector<2x16xf32>
    %11 = vector.multi_reduction <add>, %10, %cst [2] : vector<2x16x32xf32> to vector<2x16xf32>
    %12 = vector.shape_cast %11 : vector<2x16xf32> to vector<2x16x1xf32>
    %13 = vector.shape_cast %5 : vector<1x32xf32> to vector<1x1x32xf32>
    %14 = vector.broadcast %13 : vector<1x1x32xf32> to vector<2x8x32xf32>
    %15 = arith.mulf %1, %14 : vector<2x8x32xf32>
    %cst_16 = arith.constant dense<0.000000e+00> : vector<2x8xf32>
    %16 = vector.multi_reduction <add>, %15, %cst_16 [2] : vector<2x8x32xf32> to vector<2x8xf32>
    %17 = vector.shape_cast %16 : vector<2x8xf32> to vector<2x8x1xf32>
    %18 = tpu.transpose %17, [0, 2, 1] : vector<2x8x1xf32> -> vector<2x1x8xf32>
    %19 = vector.shape_cast %6 : vector<1x32xf32> to vector<1x1x32xf32>
    %20 = vector.broadcast %19 : vector<1x1x32xf32> to vector<2x8x32xf32>
    %21 = arith.mulf %1, %20 : vector<2x8x32xf32>
    "tpu.trace_start"() <{level = 10 : i32, message = "bcd,bqd->bcq"}> : () -> ()
    %cst_17 = arith.constant dense<0.000000e+00> : vector<2x16x8xf32>
    %22 = tpu.matmul %0, %21, %cst_17 {dimension_numbers = #tpu.dot_dimension_numbers<[2], [2], [1], [1], [0, 0, 0, 1, 1, 1], [0], [0]>} : vector<2x16x32xf32>, vector<2x8x32xf32>, vector<2x16x8xf32> -> vector<2x16x8xf32>
    "tpu.trace_stop"() : () -> ()
    %23 = vector.broadcast %12 : vector<2x16x1xf32> to vector<2x16x8xf32>
    %24 = arith.addf %22, %23 : vector<2x16x8xf32>
    %25 = vector.broadcast %18 : vector<2x1x8xf32> to vector<2x16x8xf32>
    %26 = arith.addf %24, %25 : vector<2x16x8xf32>
    %27 = vector.broadcast %7 : f32 to vector<2x16x8xf32>
    %28 = arith.addf %26, %27 : vector<2x16x8xf32>
    %cst_18 = arith.constant 1.000000e+00 : f32
    %29 = vector.broadcast %cst_18 : f32 to vector<2x1x8xf32>
    %30 = arith.subf %29, %3 : vector<2x1x8xf32>
    %cst_19 = arith.constant -1.000000e+30 : f32
    %31 = vector.broadcast %cst_19 : f32 to vector<2x1x8xf32>
    %32 = arith.mulf %30, %31 : vector<2x1x8xf32>
    %cst_20 = arith.constant 1.000000e+00 : f32
    %33 = vector.broadcast %cst_20 : f32 to vector<2x1x16xf32>
    %34 = arith.subf %33, %2 : vector<2x1x16xf32>
    %cst_21 = arith.constant -1.000000e+30 : f32
    %35 = vector.broadcast %cst_21 : f32 to vector<2x1x16xf32>
    %36 = arith.mulf %34, %35 : vector<2x1x16xf32>
    %37 = vector.broadcast %32 : vector<2x1x8xf32> to vector<2x16x8xf32>
    %38 = arith.addf %28, %37 : vector<2x16x8xf32>
    %cst_22 = arith.constant dense<0xFF800000> : vector<2x16xf32>
    %39 = vector.multi_reduction <maximumf>, %38, %cst_22 [2] : vector<2x16x8xf32> to vector<2x16xf32>
    %40 = vector.shape_cast %39 : vector<2x16xf32> to vector<2x16x1xf32>
    %41 = vector.broadcast %40 : vector<2x16x1xf32> to vector<2x16x8xf32>
    %42 = arith.subf %38, %41 : vector<2x16x8xf32>
    %43 = math.exp %42 : vector<2x16x8xf32>
    %cst_23 = arith.constant dense<0.000000e+00> : vector<2x16xf32>
    %44 = vector.multi_reduction <add>, %43, %cst_23 [2] : vector<2x16x8xf32> to vector<2x16xf32>
    %45 = vector.shape_cast %44 : vector<2x16xf32> to vector<2x16x1xf32>
    %46 = tpu.reciprocal %45 {approx = true} : vector<2x16x1xf32> -> vector<2x16x1xf32>
    %47 = tpu.transpose %28, [0, 2, 1] : vector<2x16x8xf32> -> vector<2x8x16xf32>
    %48 = vector.broadcast %36 : vector<2x1x16xf32> to vector<2x8x16xf32>
    %49 = arith.addf %47, %48 : vector<2x8x16xf32>
    %cst_24 = arith.constant dense<0xFF800000> : vector<2x8xf32>
    %50 = vector.multi_reduction <maximumf>, %49, %cst_24 [2] : vector<2x8x16xf32> to vector<2x8xf32>
    %51 = vector.shape_cast %50 : vector<2x8xf32> to vector<2x8x1xf32>
    %52 = vector.broadcast %51 : vector<2x8x1xf32> to vector<2x8x16xf32>
    %53 = arith.subf %49, %52 : vector<2x8x16xf32>
    %54 = math.exp %53 : vector<2x8x16xf32>
    %cst_25 = arith.constant dense<0.000000e+00> : vector<2x8xf32>
    %55 = vector.multi_reduction <add>, %54, %cst_25 [2] : vector<2x8x16xf32> to vector<2x8xf32>
    %56 = vector.shape_cast %55 : vector<2x8xf32> to vector<2x8x1xf32>
    %57 = tpu.reciprocal %56 {approx = true} : vector<2x8x1xf32> -> vector<2x8x1xf32>
    "tpu.trace_start"() <{level = 10 : i32, message = "bcq,bqd->bcd"}> : () -> ()
    %cst_26 = arith.constant dense<0.000000e+00> : vector<2x16x32xf32>
    %58 = tpu.matmul %43, %1, %cst_26 {dimension_numbers = #tpu.dot_dimension_numbers<[2], [1], [1], [2], [0, 0, 0, 1, 1, 2], [0], [0]>} : vector<2x16x8xf32>, vector<2x8x32xf32>, vector<2x16x32xf32> -> vector<2x16x32xf32>
    "tpu.trace_stop"() : () -> ()
    %59 = vector.broadcast %46 : vector<2x16x1xf32> to vector<2x16x32xf32>
    %60 = arith.mulf %58, %59 : vector<2x16x32xf32>
    "tpu.trace_start"() <{level = 10 : i32, message = "bqc,bcd->bqd"}> : () -> ()
    %cst_27 = arith.constant dense<0.000000e+00> : vector<2x8x32xf32>
    %61 = tpu.matmul %54, %0, %cst_27 {dimension_numbers = #tpu.dot_dimension_numbers<[2], [1], [1], [2], [0, 0, 0, 1, 1, 2], [0], [0]>} : vector<2x8x16xf32>, vector<2x16x32xf32>, vector<2x8x32xf32> -> vector<2x8x32xf32>
    "tpu.trace_stop"() : () -> ()
    %62 = vector.broadcast %57 : vector<2x8x1xf32> to vector<2x8x32xf32>
    %63 = arith.mulf %61, %62 : vector<2x8x32xf32>
    "tpu.trace_start"() <{level = 10 : i32, message = "bcq,bqd->bcd"}> : () -> ()
    %cst_28 = arith.constant dense<0.000000e+00> : vector<2x16x32xf32>
    %64 = tpu.matmul %43, %63, %cst_28 {dimension_numbers = #tpu.dot_dimension_numbers<[2], [1], [1], [2], [0, 0, 0, 1, 1, 2], [0], [0]>} : vector<2x16x8xf32>, vector<2x8x32xf32>, vector<2x16x32xf32> -> vector<2x16x32xf32>
    "tpu.trace_stop"() : () -> ()
    %65 = vector.broadcast %46 : vector<2x16x1xf32> to vector<2x16x32xf32>
    %66 = arith.mulf %64, %65 : vector<2x16x32xf32>
    %67 = arith.mulf %0, %60 : vector<2x16x32xf32>
    %68 = arith.mulf %0, %66 : vector<2x16x32xf32>
    %69 = tpu.concatenate %0, %60, %67, %68 in 2 : vector<2x16x32xf32>, vector<2x16x32xf32>, vector<2x16x32xf32>, vector<2x16x32xf32> -> vector<2x16x128xf32>
    %c0_29 = arith.constant 0 : index
    %c0_30 = arith.constant 0 : index
    %c0_31 = arith.constant 0 : index
    %70 = vector.load %arg7[%c0_29, %c0_30, %c0_31] : memref<2x16x128xf32, #tpu.memory_space<vmem>>, vector<2x16x128xf32>
    tpu.vector_store %arg7[%c0_29, %c0_30, %c0_31], %69 {strides = array<i32>} : memref<2x16x128xf32, #tpu.memory_space<vmem>>, vector<2x16x128xf32>,
    return
  }
  func.func @transform_0(%arg0: i32) -> (i32, i32, i32) {
    %c0_i32 = arith.constant 0 : i32
    %c0_i32_0 = arith.constant 0 : i32
    %c0_i32_1 = arith.constant 0 : i32
    return %arg0, %c0_i32, %c0_i32_0 : i32, i32, i32
  }
  func.func @transform_1(%arg0: i32) -> (i32, i32, i32) {
    %c0_i32 = arith.constant 0 : i32
    %c0_i32_0 = arith.constant 0 : i32
    %c0_i32_1 = arith.constant 0 : i32
    return %arg0, %c0_i32, %c0_i32_0 : i32, i32, i32
  }
  func.func @transform_2(%arg0: i32) -> (i32, i32, i32) {
    %c0_i32 = arith.constant 0 : i32
    %c0_i32_0 = arith.constant 0 : i32
    %c0_i32_1 = arith.constant 0 : i32
    return %arg0, %c0_i32, %c0_i32_0 : i32, i32, i32
  }
  func.func @transform_3(%arg0: i32) -> (i32, i32, i32) {
    %c0_i32 = arith.constant 0 : i32
    %c0_i32_0 = arith.constant 0 : i32
    %c0_i32_1 = arith.constant 0 : i32
    return %arg0, %c0_i32, %c0_i32_0 : i32, i32, i32
  }
  func.func @transform_4(%arg0: i32) -> (i32, i32) {
    %c0_i32 = arith.constant 0 : i32
    %c0_i32_0 = arith.constant 0 : i32
    %c0_i32_1 = arith.constant 0 : i32
    return %c0_i32, %c0_i32_0 : i32, i32
  }
  func.func @transform_5(%arg0: i32) -> i32 {
    %c0_i32 = arith.constant 0 : i32
    %c0_i32_0 = arith.constant 0 : i32
    return %c0_i32 : i32
  }
  func.func @transform_6(%arg0: i32) -> (i32, i32, i32) {
    %c0_i32 = arith.constant 0 : i32
    %c0_i32_0 = arith.constant 0 : i32
    %c0_i32_1 = arith.constant 0 : i32
    return %arg0, %c0_i32, %c0_i32_0 : i32, i32, i32
  }
}

</mosaic_0001>

<llo_original>
// kernel: tpu_custom_call.1
$region0: #{tpu_custom_call.1}
  #allocation0 [shape = 'u32[]', space=smem, size = 0x4, offset = 0x4, fixed_abs, tag = 'smem constant byte address 0x4 - core index']
  #allocation1 [shape = 'u32[144,128]{1,0:T(1,128)}', space=vmem, size = 0x12000, scoped, tag = 'internal scratch']
  #allocation2 [shape = 'f32[1]{0:T(128)S(6)}', space=smem, size = 0x200, scoped, tag = 'scoped memory for tpu_custom_call.1']
  %s0 = inlined_call_operand.hbm [shape: f32[2,16,32], index: 0, kind: input, shape index: {}]
  %s1 = inlined_call_operand.hbm [shape: f32[2,8,32], index: 1, kind: input, shape index: {}]
  %s2 = inlined_call_operand.vmem [shape: f32[2,1,16], index: 2, kind: input, shape index: {}]
  %s3 = inlined_call_operand.vmem [shape: f32[2,1,8], index: 3, kind: input, shape index: {}]
  %s4 = inlined_call_operand.vmem [shape: f32[8,32], index: 4, kind: input, shape index: {}]
  %s5 = inlined_call_operand.<no memory space> [shape: f32[1], index: 5, kind: input, shape index: {}]
  %s6 = inlined_call_operand.hbm [shape: f32[2,16,128], index: 6, kind: output, shape index: {}]
  %s7 = sld [smem:[#allocation0]]
  $region42: #{tpu_custom_call.1} parent=0
    _
  %s9 = ssub.s32 1, %s7
  %s10 = scalar_select 0, %s9, %s7
  %11 = sst [smem:[#allocation2]] %s5
  $region1: #{tpu_custom_call.1} parent=0
    #allocation3 [shape = 'u8[16384]{0}', space=vmem, size = 0x4000, scoped, tag = 'input window, operand 0, single buffered']
    #allocation4 [shape = 's32[1]{0}', space=sflag, size = 0x4, scoped, tag = 'scoped memory for tpu_custom_call.1']
    #allocation5 [shape = 's32[1]{0}', space=sflag, size = 0x4, scoped, tag = 'scoped memory for tpu_custom_call.1']
    #allocation6 [shape = 'u8[8192]{0}', space=vmem, size = 0x2000, scoped, tag = 'input window, operand 1, single buffered']
    #allocation7 [shape = 's32[1]{0}', space=sflag, size = 0x4, scoped, tag = 'scoped memory for tpu_custom_call.1']
    #allocation8 [shape = 'u8[16384]{0}', space=vmem, size = 0x4000, scoped, tag = 'output window, operand 0, single buffered']
    %12 = vsyncpa [#allocation4], 0
    %13 = vsyncpa [#allocation7], 0
    %14 = vsyncpa [#allocation5], 0
    // Predicated region
    $region2: #{tpu_custom_call.1} parent=1 // pred_check
      _
    $region3: #{tpu_custom_call.1} parent=1 // pred_check_branch
      %16 = sbr.rel (0) target = $region5
    $region4: #{tpu_custom_call.1} parent=1 // pred_region
      %s18 = ssub.s32 512, 512
      %19 = vsyncadd [#allocation4], %s18
      %s20 = sshll.u32 [#allocation3], 4
      %s21 = int_to_ptr.vmem [resolvable:$true] %s20
      %26 = dma.hbm_to_vmem [thread:$0]  %s0, 512, %s21, [#allocation4], 128, 128, 8
    $region5: #{tpu_custom_call.1} parent=1 // pred_fallthru
      _
    // Predicated region
    $region6: #{tpu_custom_call.1} parent=1 // pred_check
      _
    $region7: #{tpu_custom_call.1} parent=1 // pred_check_branch
      %28 = sbr.rel (0) target = $region9
    $region8: #{tpu_custom_call.1} parent=1 // pred_region
      %s30 = ssub.s32 256, 256
      %31 = vsyncadd [#allocation7], %s30
      %s32 = sshll.u32 [#allocation6], 4
      %s33 = int_to_ptr.vmem [resolvable:$true] %s32
      %38 = dma.hbm_to_vmem [thread:$0]  %s1, 256, %s33, [#allocation7], 128, 128, 8
    $region9: #{tpu_custom_call.1} parent=1 // pred_fallthru
      _
    // Predicated region
    $region10: #{tpu_custom_call.1} parent=1 // pred_check
      _
    $region11: #{tpu_custom_call.1} parent=1 // pred_check_branch
      %40 = sbr.rel (0) target = $region13
    $region12: #{tpu_custom_call.1} parent=1 // pred_region
      _
    $region13: #{tpu_custom_call.1} parent=1 // pred_fallthru
      _
    // Predicated region
    $region14: #{tpu_custom_call.1} parent=1 // pred_check
      _
    $region15: #{tpu_custom_call.1} parent=1 // pred_check_branch
      %42 = sbr.rel (0) target = $region17
    $region16: #{tpu_custom_call.1} parent=1 // pred_region
      _
    $region17: #{tpu_custom_call.1} parent=1 // pred_fallthru
      _
    // Predicated region
    $region18: #{tpu_custom_call.1} parent=1 // pred_check
      _
    $region19: #{tpu_custom_call.1} parent=1 // pred_check_branch
      %44 = sbr.rel (0) target = $region21
    $region20: #{tpu_custom_call.1} parent=1 // pred_region
      _
    $region21: #{tpu_custom_call.1} parent=1 // pred_fallthru
      _
    // Predicated region
    $region22: #{tpu_custom_call.1} parent=1 // pred_check
      _
    $region23: #{tpu_custom_call.1} parent=1 // pred_check_branch
      %46 = sbr.rel (0) target = $region25
    $region24: #{tpu_custom_call.1} parent=1 // pred_region
      _
    $region25: #{tpu_custom_call.1} parent=1 // pred_fallthru
      _
    // Predicated region
    $region26: #{tpu_custom_call.1} parent=1 // pred_check
      _
    $region27: #{tpu_custom_call.1} parent=1 // pred_check_branch
      %48 = sbr.rel (0) target = $region29
    $region28: #{tpu_custom_call.1} parent=1 // pred_region
      %49 = dma.done [#allocation4], 512
    $region29: #{tpu_custom_call.1} parent=1 // pred_fallthru
      _
    // Predicated region
    $region30: #{tpu_custom_call.1} parent=1 // pred_check
      _
    $region31: #{tpu_custom_call.1} parent=1 // pred_check_branch
      %51 = sbr.rel (0) target = $region33
    $region32: #{tpu_custom_call.1} parent=1 // pred_region
      %52 = dma.done [#allocation7], 256
    $region33: #{tpu_custom_call.1} parent=1 // pred_fallthru
      _
    %v53 = vld [vmem:[#allocation3] sm:$0xff]
    %v54 = vld [vmem:[#allocation3 + $0x8] sm:$0xff]
    %v55 = vld [vmem:[#allocation3 + $0x10] sm:$0xff]
    %v56 = vld [vmem:[#allocation3 + $0x18] sm:$0xff]
    %v57 = vld [vmem:[#allocation6] sm:$0xff]
    %v58 = vld [vmem:[#allocation6 + $0x8] sm:$0xff]
    %v59 = vld [vmem:[%s2] sm:$0x1]
    %v60 = vld [vmem:[%s2 + $0x1] sm:$0x1]
    %v61 = vld [vmem:[%s3] sm:$0x1]
    %v62 = vld [vmem:[%s3 + $0x1] sm:$0x1]
    %v63 = vld [vmem:[%s4] sm:$0x1]
    %v64 = vld [vmem:[%s4 + $0x1] sm:$0x1]
    %v65 = vld [vmem:[%s4 + $0x2] sm:$0x1]
    %s66 = sld [smem:[#allocation2]]
    %v67 = vlaneseq
    %v68 = vshrl.u32 %v67, 7
    %v69 = vsub.s32 0, %v68
    %v70 = vrot.slane %v63, %v69
    %v71 = vmul.f32 %v53, %v70
    %v72 = vmul.f32 %v54, %v70
    %v73 = vmul.f32 %v55, %v70
    %v74 = vmul.f32 %v56, %v70
    %vm75 = vcmask 261120
    %v76 = vsel %vm75, %v71, 0.0
    %77 = vadd.xlane.f32.xlu0 %v76
    %v78 = vpop.xlane.xlu0 %77
    %v79 = vsel %vm75, %v72, 0.0
    %80 = vadd.xlane.f32.xlu0 %v79
    %v81 = vpop.xlane.xlu0 %80
    %v82 = vsel %vm75, %v73, 0.0
    %83 = vadd.xlane.f32.xlu0 %v82
    %v84 = vpop.xlane.xlu0 %83
    %v85 = vsel %vm75, %v74, 0.0
    %86 = vadd.xlane.f32.xlu0 %v85
    %v87 = vpop.xlane.xlu0 %86
    %v88 = vlaneseq
    %v89 = vshrl.u32 %v88, 7
    %v90 = vsub.s32 0, %v89
    %v91 = vrot.slane %v64, %v90
    %v92 = vmul.f32 %v57, %v91
    %v93 = vmul.f32 %v58, %v91
    %v94 = vsel %vm75, %v92, 0.0
    %95 = vadd.xlane.f32.xlu0 %v94
    %v96 = vpop.xlane.xlu0 %95
    %v97 = vsel %vm75, %v93, 0.0
    %98 = vadd.xlane.f32.xlu0 %v97
    %v99 = vpop.xlane.xlu0 %98
    %100 = vxpose.xlu0.b32.start [1/16] %v96, 128
    %101 = vxpose.xlu0.b32.cont [2/16] 0.0, 128
    %102 = vxpose.xlu0.b32.cont [3/16] 0.0, 128
    %103 = vxpose.xlu0.b32.cont [4/16] 0.0, 128
    %104 = vxpose.xlu0.b32.cont [5/16] 0.0, 128
    %105 = vxpose.xlu0.b32.cont [6/16] 0.0, 128
    %106 = vxpose.xlu0.b32.cont [7/16] 0.0, 128
    %107 = vxpose.xlu0.b32.cont [8/16] 0.0, 128
    %108 = vxpose.xlu0.b32.cont [9/16] 0.0, 128
    %109 = vxpose.xlu0.b32.cont [10/16] 0.0, 128
    %110 = vxpose.xlu0.b32.cont [11/16] 0.0, 128
    %111 = vxpose.xlu0.b32.cont [12/16] 0.0, 128
    %112 = vxpose.xlu0.b32.cont [13/16] 0.0, 128
    %113 = vxpose.xlu0.b32.cont [14/16] 0.0, 128
    %114 = vxpose.xlu0.b32.cont [15/16] 0.0, 128
    %115 = vxpose.xlu0.b32.end [16/16] 0.0, 128
    %v116 = vpop.trf.xlu0
    %v117 = vpop.trf.xlu0
    %v118 = vpop.trf.xlu0
    %v119 = vpop.trf.xlu0
    %v120 = vpop.trf.xlu0
    %v121 = vpop.trf.xlu0
    %v122 = vpop.trf.xlu0
    %v123 = vpop.trf.xlu0
    %v124 = vpop.trf.xlu0
    %v125 = vpop.trf.xlu0
    %v126 = vpop.trf.xlu0
    %v127 = vpop.trf.xlu0
    %v128 = vpop.trf.xlu0
    %v129 = vpop.trf.xlu0
    %v130 = vpop.trf.xlu0
    %v131 = vpop.trf.xlu0
    %132 = vxpose.xlu0.b32.start [1/16] %v99, 128
    %133 = vxpose.xlu0.b32.cont [2/16] 0.0, 128
    %134 = vxpose.xlu0.b32.cont [3/16] 0.0, 128
    %135 = vxpose.xlu0.b32.cont [4/16] 0.0, 128
    %136 = vxpose.xlu0.b32.cont [5/16] 0.0, 128
    %137 = vxpose.xlu0.b32.cont [6/16] 0.0, 128
    %138 = vxpose.xlu0.b32.cont [7/16] 0.0, 128
    %139 = vxpose.xlu0.b32.cont [8/16] 0.0, 128
    %140 = vxpose.xlu0.b32.cont [9/16] 0.0, 128
    %141 = vxpose.xlu0.b32.cont [10/16] 0.0, 128
    %142 = vxpose.xlu0.b32.cont [11/16] 0.0, 128
    %143 = vxpose.xlu0.b32.cont [12/16] 0.0, 128
    %144 = vxpose.xlu0.b32.cont [13/16] 0.0, 128
    %145 = vxpose.xlu0.b32.cont [14/16] 0.0, 128
    %146 = vxpose.xlu0.b32.cont [15/16] 0.0, 128
    %147 = vxpose.xlu0.b32.end [16/16] 0.0, 128
    %v148 = vpop.trf.xlu0
    %v149 = vpop.trf.xlu0
    %v150 = vpop.trf.xlu0
    %v151 = vpop.trf.xlu0
    %v152 = vpop.trf.xlu0
    %v153 = vpop.trf.xlu0
    %v154 = vpop.trf.xlu0
    %v155 = vpop.trf.xlu0
    %v156 = vpop.trf.xlu0
    %v157 = vpop.trf.xlu0
    %v158 = vpop.trf.xlu0
    %v159 = vpop.trf.xlu0
    %v160 = vpop.trf.xlu0
    %v161 = vpop.trf.xlu0
    %v162 = vpop.trf.xlu0
    %v163 = vpop.trf.xlu0
    %v164 = vlaneseq
    %v165 = vshrl.u32 %v164, 7
    %v166 = vsub.s32 0, %v165
    %v167 = vrot.slane %v65, %v166
    %v168 = vmul.f32 %v57, %v167
    %v169 = vmul.f32 %v58, %v167
    %v171 = vsel %vm75, %v53, 0
    %v174 = vsel %vm75, %v54, 0
    %v177 = vsel %vm75, %v168, 0
    %179 = vmatprep.subr.mxu0 0.0
    %180 = vmatpush1.xpose.msra.mxu0 %v177
    %181 = vmatprep.subr.mxu0 0.0
    %182 = vmatpush1.xpose.msra.mxu0 0.0
    %183 = vmatprep.subr.mxu0 0.0
    %184 = vmatpush1.xpose.msra.mxu0 0.0
    %185 = vmatprep.subr.mxu0 0.0
    %186 = vmatpush1.xpose.msra.mxu0 0.0
    %187 = vmatprep.subr.mxu0 0.0
    %188 = vmatpush1.xpose.msra.mxu0 0.0
    %189 = vmatprep.subr.mxu0 0.0
    %190 = vmatpush1.xpose.msra.mxu0 0.0
    %191 = vmatprep.subr.mxu0 0.0
    %192 = vmatpush1.xpose.msra.mxu0 0.0
    %193 = vmatprep.subr.mxu0 0.0
    %194 = vmatpush1.xpose.msra.mxu0 0.0
    %195 = vmatprep.subr.mxu0 0.0
    %196 = vmatpush1.xpose.msra.mxu0 0.0
    %197 = vmatprep.subr.mxu0 0.0
    %198 = vmatpush1.xpose.msra.mxu0 0.0
    %199 = vmatprep.subr.mxu0 0.0
    %200 = vmatpush1.xpose.msra.mxu0 0.0
    %201 = vmatprep.subr.mxu0 0.0
    %202 = vmatpush1.xpose.msra.mxu0 0.0
    %203 = vmatprep.subr.mxu0 0.0
    %204 = vmatpush1.xpose.msra.mxu0 0.0
    %205 = vmatprep.subr.mxu0 0.0
    %206 = vmatpush1.xpose.msra.mxu0 0.0
    %207 = vmatprep.subr.mxu0 0.0
    %208 = vmatpush1.xpose.msra.mxu0 0.0
    %209 = vmatprep.subr.mxu0 0.0
    %210 = vmatpush1.xpose.msra.mxu0 0.0
    %211 = vmatprep.subr.mxu0 0.0
    %212 = vmatpush1.xpose.msra.mxu0 0.0
    %213 = vmatprep.subr.mxu0 0.0
    %214 = vmatpush1.xpose.msra.mxu0 0.0
    %215 = vmatprep.subr.mxu0 0.0
    %216 = vmatpush1.xpose.msra.mxu0 0.0
    %217 = vmatprep.subr.mxu0 0.0
    %218 = vmatpush1.xpose.msra.mxu0 0.0
    %219 = vmatprep.subr.mxu0 0.0
    %220 = vmatpush1.xpose.msra.mxu0 0.0
    %221 = vmatprep.subr.mxu0 0.0
    %222 = vmatpush1.xpose.msra.mxu0 0.0
    %223 = vmatprep.subr.mxu0 0.0
    %224 = vmatpush1.xpose.msra.mxu0 0.0
    %225 = vmatprep.subr.mxu0 0.0
    %226 = vmatpush1.xpose.msra.mxu0 0.0
    %227 = vmatprep.subr.mxu0 0.0
    %228 = vmatpush1.xpose.msra.mxu0 0.0
    %229 = vmatprep.subr.mxu0 0.0
    %230 = vmatpush1.xpose.msra.mxu0 0.0
    %231 = vmatprep.subr.mxu0 0.0
    %232 = vmatpush1.xpose.msra.mxu0 0.0
    %233 = vmatprep.subr.mxu0 0.0
    %234 = vmatpush1.xpose.msra.mxu0 0.0
    %235 = vmatprep.subr.mxu0 0.0
    %236 = vmatpush1.xpose.msra.mxu0 0.0
    %237 = vmatprep.subr.mxu0 0.0
    %238 = vmatpush1.xpose.msra.mxu0 0.0
    %239 = vmatprep.subr.mxu0 0.0
    %240 = vmatpush1.xpose.msra.mxu0 0.0
    %241 = vmatprep.subr.mxu0 0.0
    %242 = vmatpush1.xpose.msra.mxu0 0.0
    %243 = vmatprep.mubr.f32.mxu0 0.0
    %244 = vmatmul.mubr.f32.gmra.mrb[0].mxu0 %v171
    %v245 = vpop.f32.mrb[0].mxu0
    %v246 = vadd.f32 %v78, %v245
    %v247 = vpop.f32.mrb[0].mxu0
    %248 = vmatprep.mubr.f32.mxu0 0.0
    %249 = vmatmul.mubr.f32.gmra.mrb[0].mxu0 %v174
    %v250 = vpop.f32.mrb[0].mxu0
    %v251 = vadd.f32 %v81, %v250
    %v252 = vpop.f32.mrb[0].mxu0
    %253 = vdwg.mxu0
    %v255 = vsel %vm75, %v55, 0
    %v258 = vsel %vm75, %v56, 0
    %v261 = vsel %vm75, %v169, 0
    %263 = vmatprep.subr.mxu0 0.0
    %264 = vmatpush1.xpose.msra.mxu0 %v261
    %265 = vmatprep.subr.mxu0 0.0
    %266 = vmatpush1.xpose.msra.mxu0 0.0
    %267 = vmatprep.subr.mxu0 0.0
    %268 = vmatpush1.xpose.msra.mxu0 0.0
    %269 = vmatprep.subr.mxu0 0.0
    %270 = vmatpush1.xpose.msra.mxu0 0.0
    %271 = vmatprep.subr.mxu0 0.0
    %272 = vmatpush1.xpose.msra.mxu0 0.0
    %273 = vmatprep.subr.mxu0 0.0
    %274 = vmatpush1.xpose.msra.mxu0 0.0
    %275 = vmatprep.subr.mxu0 0.0
    %276 = vmatpush1.xpose.msra.mxu0 0.0
    %277 = vmatprep.subr.mxu0 0.0
    %278 = vmatpush1.xpose.msra.mxu0 0.0
    %279 = vmatprep.subr.mxu0 0.0
    %280 = vmatpush1.xpose.msra.mxu0 0.0
    %281 = vmatprep.subr.mxu0 0.0
    %282 = vmatpush1.xpose.msra.mxu0 0.0
    %283 = vmatprep.subr.mxu0 0.0
    %284 = vmatpush1.xpose.msra.mxu0 0.0
    %285 = vmatprep.subr.mxu0 0.0
    %286 = vmatpush1.xpose.msra.mxu0 0.0
    %287 = vmatprep.subr.mxu0 0.0
    %288 = vmatpush1.xpose.msra.mxu0 0.0
    %289 = vmatprep.subr.mxu0 0.0
    %290 = vmatpush1.xpose.msra.mxu0 0.0
    %291 = vmatprep.subr.mxu0 0.0
    %292 = vmatpush1.xpose.msra.mxu0 0.0
    %293 = vmatprep.subr.mxu0 0.0
    %294 = vmatpush1.xpose.msra.mxu0 0.0
    %295 = vmatprep.subr.mxu0 0.0
    %296 = vmatpush1.xpose.msra.mxu0 0.0
    %297 = vmatprep.subr.mxu0 0.0
    %298 = vmatpush1.xpose.msra.mxu0 0.0
    %299 = vmatprep.subr.mxu0 0.0
    %300 = vmatpush1.xpose.msra.mxu0 0.0
    %301 = vmatprep.subr.mxu0 0.0
    %302 = vmatpush1.xpose.msra.mxu0 0.0
    %303 = vmatprep.subr.mxu0 0.0
    %304 = vmatpush1.xpose.msra.mxu0 0.0
    %305 = vmatprep.subr.mxu0 0.0
    %306 = vmatpush1.xpose.msra.mxu0 0.0
    %307 = vmatprep.subr.mxu0 0.0
    %308 = vmatpush1.xpose.msra.mxu0 0.0
    %309 = vmatprep.subr.mxu0 0.0
    %310 = vmatpush1.xpose.msra.mxu0 0.0
    %311 = vmatprep.subr.mxu0 0.0
    %312 = vmatpush1.xpose.msra.mxu0 0.0
    %313 = vmatprep.subr.mxu0 0.0
    %314 = vmatpush1.xpose.msra.mxu0 0.0
    %315 = vmatprep.subr.mxu0 0.0
    %316 = vmatpush1.xpose.msra.mxu0 0.0
    %317 = vmatprep.subr.mxu0 0.0
    %318 = vmatpush1.xpose.msra.mxu0 0.0
    %319 = vmatprep.subr.mxu0 0.0
    %320 = vmatpush1.xpose.msra.mxu0 0.0
    %321 = vmatprep.subr.mxu0 0.0
    %322 = vmatpush1.xpose.msra.mxu0 0.0
    %323 = vmatprep.subr.mxu0 0.0
    %324 = vmatpush1.xpose.msra.mxu0 0.0
    %325 = vmatprep.subr.mxu0 0.0
    %326 = vmatpush1.xpose.msra.mxu0 0.0
    %327 = vmatprep.mubr.f32.mxu0 0.0
    %328 = vmatmul.mubr.f32.gmra.mrb[0].mxu0 %v255
    %v329 = vpop.f32.mrb[0].mxu0
    %v330 = vadd.f32 %v84, %v329
    %v331 = vpop.f32.mrb[0].mxu0
    %332 = vmatprep.mubr.f32.mxu0 0.0
    %333 = vmatmul.mubr.f32.gmra.mrb[0].mxu0 %v258
    %v334 = vpop.f32.mrb[0].mxu0
    %v335 = vadd.f32 %v87, %v334
    %v336 = vpop.f32.mrb[0].mxu0
    %337 = vdwg.mxu0
    %v338 = vlaneseq
    %v339 = vshrl.u32 %v338, 7
    %v340 = vsub.s32 0, %v339
    %v341 = vrot.slane %v116, %v340
    %v342 = vlaneseq
    %v343 = vshrl.u32 %v342, 7
    %v344 = vsub.s32 0, %v343
    %v345 = vrot.slane %v148, %v344
    %v346 = vadd.f32 %v246, %v341
    %v347 = vadd.f32 %v251, %v341
    %v348 = vadd.f32 %v330, %v345
    %v349 = vadd.f32 %v335, %v345
    %v350 = vstv %s66
    %v351 = vadd.f32 %v346, %v350
    %v352 = vadd.f32 %v347, %v350
    %v353 = vadd.f32 %v348, %v350
    %v354 = vadd.f32 %v349, %v350
    %v355 = vsub.f32 1.0, %v61
    %v356 = vsub.f32 1.0, %v62
    %v357 = vmul.f32 %v355, -1e+30
    %v358 = vmul.f32 %v356, -1e+30
    %v359 = vsub.f32 1.0, %v59
    %v360 = vsub.f32 1.0, %v60
    %v361 = vmul.f32 %v359, -1e+30
    %v362 = vmul.f32 %v360, -1e+30
    %v365 = vlaneseq
    %v366 = vshrl.u32 %v365, 7
    %v367 = vsub.s32 0, %v366
    %v368 = vrot.slane %v357, %v367
    %v369 = vlaneseq
    %v370 = vshrl.u32 %v369, 7
    %v371 = vsub.s32 0, %v370
    %v372 = vrot.slane %v358, %v371
    %v375 = vadd.f32 %v351, %v368
    %v376 = vadd.f32 %v352, %v368
    %v377 = vadd.f32 %v353, %v372
    %v378 = vadd.f32 %v354, %v372
    %vm379 = vcmask 64512
    %v380 = vsel %vm379, %v375, -inf
    %381 = vmax.xlane.f32.xlu0 %v380
    %v382 = vpop.xlane.xlu0 %381
    %v383 = vsel %vm379, %v376, -inf
    %384 = vmax.xlane.f32.xlu0 %v383
    %v385 = vpop.xlane.xlu0 %384
    %v386 = vsel %vm379, %v377, -inf
    %387 = vmax.xlane.f32.xlu0 %v386
    %v388 = vpop.xlane.xlu0 %387
    %v389 = vsel %vm379, %v378, -inf
    %390 = vmax.xlane.f32.xlu0 %v389
    %v391 = vpop.xlane.xlu0 %390
    %v392 = vsub.f32 %v375, %v382
    %v393 = vsub.f32 %v376, %v385
    %v394 = vsub.f32 %v377, %v388
    %v395 = vsub.f32 %v378, %v391
    %v396 = vmul.f32 %v392, 1.442695
    %v397 = vpow.pop %v396
    %v398 = vmul.f32 %v393, 1.442695
    %v399 = vpow.pop %v398
    %v400 = vmul.f32 %v394, 1.442695
    %v401 = vpow.pop %v400
    %v402 = vmul.f32 %v395, 1.442695
    %v403 = vpow.pop %v402
    %v404 = vsel %vm379, %v397, 0.0
    %405 = vadd.xlane.f32.xlu0 %v404
    %v406 = vpop.xlane.xlu0 %405
    %v407 = vsel %vm379, %v399, 0.0
    %408 = vadd.xlane.f32.xlu0 %v407
    %v409 = vpop.xlane.xlu0 %408
    %v410 = vsel %vm379, %v401, 0.0
    %411 = vadd.xlane.f32.xlu0 %v410
    %v412 = vpop.xlane.xlu0 %411
    %v413 = vsel %vm379, %v403, 0.0
    %414 = vadd.xlane.f32.xlu0 %v413
    %v415 = vpop.xlane.xlu0 %414
    %v416 = vrcp.pop %v406
    %v417 = vrcp.pop %v409
    %v418 = vrcp.pop %v412
    %v419 = vrcp.pop %v415
    %420 = vxpose.xlu0.b32.start [1/16] %v351, 128
    %421 = vxpose.xlu0.b32.cont [2/16] %v352, 128
    %422 = vxpose.xlu0.b32.cont [3/16] 0.0, 128
    %423 = vxpose.xlu0.b32.cont [4/16] 0.0, 128
    %424 = vxpose.xlu0.b32.cont [5/16] 0.0, 128
    %425 = vxpose.xlu0.b32.cont [6/16] 0.0, 128
    %426 = vxpose.xlu0.b32.cont [7/16] 0.0, 128
    %427 = vxpose.xlu0.b32.cont [8/16] 0.0, 128
    %428 = vxpose.xlu0.b32.cont [9/16] 0.0, 128
    %429 = vxpose.xlu0.b32.cont [10/16] 0.0, 128
    %430 = vxpose.xlu0.b32.cont [11/16] 0.0, 128
    %431 = vxpose.xlu0.b32.cont [12/16] 0.0, 128
    %432 = vxpose.xlu0.b32.cont [13/16] 0.0, 128
    %433 = vxpose.xlu0.b32.cont [14/16] 0.0, 128
    %434 = vxpose.xlu0.b32.cont [15/16] 0.0, 128
    %435 = vxpose.xlu0.b32.end [16/16] 0.0, 128
    %v436 = vpop.trf.xlu0
    %v437 = vpop.trf.xlu0
    %v438 = vpop.trf.xlu0
    %v439 = vpop.trf.xlu0
    %v440 = vpop.trf.xlu0
    %v441 = vpop.trf.xlu0
    %v442 = vpop.trf.xlu0
    %v443 = vpop.trf.xlu0
    %v444 = vpop.trf.xlu0
    %v445 = vpop.trf.xlu0
    %v446 = vpop.trf.xlu0
    %v447 = vpop.trf.xlu0
    %v448 = vpop.trf.xlu0
    %v449 = vpop.trf.xlu0
    %v450 = vpop.trf.xlu0
    %v451 = vpop.trf.xlu0
    %452 = vxpose.xlu0.b32.start [1/16] %v353, 128
    %453 = vxpose.xlu0.b32.cont [2/16] %v354, 128
    %454 = vxpose.xlu0.b32.cont [3/16] 0.0, 128
    %455 = vxpose.xlu0.b32.cont [4/16] 0.0, 128
    %456 = vxpose.xlu0.b32.cont [5/16] 0.0, 128
    %457 = vxpose.xlu0.b32.cont [6/16] 0.0, 128
    %458 = vxpose.xlu0.b32.cont [7/16] 0.0, 128
    %459 = vxpose.xlu0.b32.cont [8/16] 0.0, 128
    %460 = vxpose.xlu0.b32.cont [9/16] 0.0, 128
    %461 = vxpose.xlu0.b32.cont [10/16] 0.0, 128
    %462 = vxpose.xlu0.b32.cont [11/16] 0.0, 128
    %463 = vxpose.xlu0.b32.cont [12/16] 0.0, 128
    %464 = vxpose.xlu0.b32.cont [13/16] 0.0, 128
    %465 = vxpose.xlu0.b32.cont [14/16] 0.0, 128
    %466 = vxpose.xlu0.b32.cont [15/16] 0.0, 128
    %467 = vxpose.xlu0.b32.end [16/16] 0.0, 128
    %v468 = vpop.trf.xlu0
    %v469 = vpop.trf.xlu0
    %v470 = vpop.trf.xlu0
    %v471 = vpop.trf.xlu0
    %v472 = vpop.trf.xlu0
    %v473 = vpop.trf.xlu0
    %v474 = vpop.trf.xlu0
    %v475 = vpop.trf.xlu0
    %v476 = vpop.trf.xlu0
    %v477 = vpop.trf.xlu0
    %v478 = vpop.trf.xlu0
    %v479 = vpop.trf.xlu0
    %v480 = vpop.trf.xlu0
    %v481 = vpop.trf.xlu0
    %v482 = vpop.trf.xlu0
    %v483 = vpop.trf.xlu0
    %v486 = vlaneseq
    %v487 = vshrl.u32 %v486, 7
    %v488 = vsub.s32 0, %v487
    %v489 = vrot.slane %v361, %v488
    %v490 = vlaneseq
    %v491 = vshrl.u32 %v490, 7
    %v492 = vsub.s32 0, %v491
    %v493 = vrot.slane %v362, %v492
    %v496 = vadd.f32 %v436, %v489
    %v497 = vadd.f32 %v468, %v493
    %vm498 = vcmask 130048
    %v499 = vsel %vm498, %v496, -inf
    %500 = vmax.xlane.f32.xlu0 %v499
    %v501 = vpop.xlane.xlu0 %500
    %v502 = vsel %vm498, %v497, -inf
    %503 = vmax.xlane.f32.xlu0 %v502
    %v504 = vpop.xlane.xlu0 %503
    %v505 = vsub.f32 %v496, %v501
    %v506 = vsub.f32 %v497, %v504
    %v507 = vmul.f32 %v505, 1.442695
    %v508 = vpow.pop %v507
    %v509 = vmul.f32 %v506, 1.442695
    %v510 = vpow.pop %v509
    %v511 = vsel %vm498, %v508, 0.0
    %512 = vadd.xlane.f32.xlu0 %v511
    %v513 = vpop.xlane.xlu0 %512
    %v514 = vsel %vm498, %v510, 0.0
    %515 = vadd.xlane.f32.xlu0 %v514
    %v516 = vpop.xlane.xlu0 %515
    %v517 = vrcp.pop %v513
    %v518 = vrcp.pop %v516
    %v520 = vsel %vm379, %v397, 0
    %v523 = vsel %vm379, %v399, 0
    %525 = vmatprep.subr.mxu0 0.0
    %526 = vmatpush1.msra.mxu0 %v57
    %527 = vmatprep.subr.mxu0 0.0
    %528 = vmatpush1.msra.mxu0 0.0
    %529 = vmatprep.subr.mxu0 0.0
    %530 = vmatpush1.msra.mxu0 0.0
    %531 = vmatprep.subr.mxu0 0.0
    %532 = vmatpush1.msra.mxu0 0.0
    %533 = vmatprep.subr.mxu0 0.0
    %534 = vmatpush1.msra.mxu0 0.0
    %535 = vmatprep.subr.mxu0 0.0
    %536 = vmatpush1.msra.mxu0 0.0
    %537 = vmatprep.subr.mxu0 0.0
    %538 = vmatpush1.msra.mxu0 0.0
    %539 = vmatprep.subr.mxu0 0.0
    %540 = vmatpush1.msra.mxu0 0.0
    %541 = vmatprep.subr.mxu0 0.0
    %542 = vmatpush1.msra.mxu0 0.0
    %543 = vmatprep.subr.mxu0 0.0
    %544 = vmatpush1.msra.mxu0 0.0
    %545 = vmatprep.subr.mxu0 0.0
    %546 = vmatpush1.msra.mxu0 0.0
    %547 = vmatprep.subr.mxu0 0.0
    %548 = vmatpush1.msra.mxu0 0.0
    %549 = vmatprep.subr.mxu0 0.0
    %550 = vmatpush1.msra.mxu0 0.0
    %551 = vmatprep.subr.mxu0 0.0
    %552 = vmatpush1.msra.mxu0 0.0
    %553 = vmatprep.subr.mxu0 0.0
    %554 = vmatpush1.msra.mxu0 0.0
    %555 = vmatprep.subr.mxu0 0.0
    %556 = vmatpush1.msra.mxu0 0.0
    %557 = vmatprep.subr.mxu0 0.0
    %558 = vmatpush1.msra.mxu0 0.0
    %559 = vmatprep.subr.mxu0 0.0
    %560 = vmatpush1.msra.mxu0 0.0
    %561 = vmatprep.subr.mxu0 0.0
    %562 = vmatpush1.msra.mxu0 0.0
    %563 = vmatprep.subr.mxu0 0.0
    %564 = vmatpush1.msra.mxu0 0.0
    %565 = vmatprep.subr.mxu0 0.0
    %566 = vmatpush1.msra.mxu0 0.0
    %567 = vmatprep.subr.mxu0 0.0
    %568 = vmatpush1.msra.mxu0 0.0
    %569 = vmatprep.subr.mxu0 0.0
    %570 = vmatpush1.msra.mxu0 0.0
    %571 = vmatprep.subr.mxu0 0.0
    %572 = vmatpush1.msra.mxu0 0.0
    %573 = vmatprep.subr.mxu0 0.0
    %574 = vmatpush1.msra.mxu0 0.0
    %575 = vmatprep.subr.mxu0 0.0
    %576 = vmatpush1.msra.mxu0 0.0
    %577 = vmatprep.subr.mxu0 0.0
    %578 = vmatpush1.msra.mxu0 0.0
    %579 = vmatprep.subr.mxu0 0.0
    %580 = vmatpush1.msra.mxu0 0.0
    %581 = vmatprep.subr.mxu0 0.0
    %582 = vmatpush1.msra.mxu0 0.0
    %583 = vmatprep.subr.mxu0 0.0
    %584 = vmatpush1.msra.mxu0 0.0
    %585 = vmatprep.subr.mxu0 0.0
    %586 = vmatpush1.msra.mxu0 0.0
    %587 = vmatprep.subr.mxu0 0.0
    %588 = vmatpush1.msra.mxu0 0.0
    %589 = vmatprep.mubr.f32.mxu0 0.0
    %590 = vmatmul.mubr.f32.gmra.mrb[0].mxu0 %v520
    %v591 = vpop.f32.mrb[0].mxu0
    %v592 = vadd.f32 0.0, %v591
    %v593 = vpop.f32.mrb[0].mxu0
    %594 = vmatprep.mubr.f32.mxu0 0.0
    %595 = vmatmul.mubr.f32.gmra.mrb[0].mxu0 %v523
    %v596 = vpop.f32.mrb[0].mxu0
    %v597 = vadd.f32 0.0, %v596
    %v598 = vpop.f32.mrb[0].mxu0
    %599 = vdwg.mxu0
    %v601 = vsel %vm379, %v401, 0
    %v604 = vsel %vm379, %v403, 0
    %606 = vmatprep.subr.mxu0 0.0
    %607 = vmatpush1.msra.mxu0 %v58
    %608 = vmatprep.subr.mxu0 0.0
    %609 = vmatpush1.msra.mxu0 0.0
    %610 = vmatprep.subr.mxu0 0.0
    %611 = vmatpush1.msra.mxu0 0.0
    %612 = vmatprep.subr.mxu0 0.0
    %613 = vmatpush1.msra.mxu0 0.0
    %614 = vmatprep.subr.mxu0 0.0
    %615 = vmatpush1.msra.mxu0 0.0
    %616 = vmatprep.subr.mxu0 0.0
    %617 = vmatpush1.msra.mxu0 0.0
    %618 = vmatprep.subr.mxu0 0.0
    %619 = vmatpush1.msra.mxu0 0.0
    %620 = vmatprep.subr.mxu0 0.0
    %621 = vmatpush1.msra.mxu0 0.0
    %622 = vmatprep.subr.mxu0 0.0
    %623 = vmatpush1.msra.mxu0 0.0
    %624 = vmatprep.subr.mxu0 0.0
    %625 = vmatpush1.msra.mxu0 0.0
    %626 = vmatprep.subr.mxu0 0.0
    %627 = vmatpush1.msra.mxu0 0.0
    %628 = vmatprep.subr.mxu0 0.0
    %629 = vmatpush1.msra.mxu0 0.0
    %630 = vmatprep.subr.mxu0 0.0
    %631 = vmatpush1.msra.mxu0 0.0
    %632 = vmatprep.subr.mxu0 0.0
    %633 = vmatpush1.msra.mxu0 0.0
    %634 = vmatprep.subr.mxu0 0.0
    %635 = vmatpush1.msra.mxu0 0.0
    %636 = vmatprep.subr.mxu0 0.0
    %637 = vmatpush1.msra.mxu0 0.0
    %638 = vmatprep.subr.mxu0 0.0
    %639 = vmatpush1.msra.mxu0 0.0
    %640 = vmatprep.subr.mxu0 0.0
    %641 = vmatpush1.msra.mxu0 0.0
    %642 = vmatprep.subr.mxu0 0.0
    %643 = vmatpush1.msra.mxu0 0.0
    %644 = vmatprep.subr.mxu0 0.0
    %645 = vmatpush1.msra.mxu0 0.0
    %646 = vmatprep.subr.mxu0 0.0
    %647 = vmatpush1.msra.mxu0 0.0
    %648 = vmatprep.subr.mxu0 0.0
    %649 = vmatpush1.msra.mxu0 0.0
    %650 = vmatprep.subr.mxu0 0.0
    %651 = vmatpush1.msra.mxu0 0.0
    %652 = vmatprep.subr.mxu0 0.0
    %653 = vmatpush1.msra.mxu0 0.0
    %654 = vmatprep.subr.mxu0 0.0
    %655 = vmatpush1.msra.mxu0 0.0
    %656 = vmatprep.subr.mxu0 0.0
    %657 = vmatpush1.msra.mxu0 0.0
    %658 = vmatprep.subr.mxu0 0.0
    %659 = vmatpush1.msra.mxu0 0.0
    %660 = vmatprep.subr.mxu0 0.0
    %661 = vmatpush1.msra.mxu0 0.0
    %662 = vmatprep.subr.mxu0 0.0
    %663 = vmatpush1.msra.mxu0 0.0
    %664 = vmatprep.subr.mxu0 0.0
    %665 = vmatpush1.msra.mxu0 0.0
    %666 = vmatprep.subr.mxu0 0.0
    %667 = vmatpush1.msra.mxu0 0.0
    %668 = vmatprep.subr.mxu0 0.0
    %669 = vmatpush1.msra.mxu0 0.0
    %670 = vmatprep.mubr.f32.mxu0 0.0
    %671 = vmatmul.mubr.f32.gmra.mrb[0].mxu0 %v601
    %v672 = vpop.f32.mrb[0].mxu0
    %v673 = vadd.f32 0.0, %v672
    %v674 = vpop.f32.mrb[0].mxu0
    %675 = vmatprep.mubr.f32.mxu0 0.0
    %676 = vmatmul.mubr.f32.gmra.mrb[0].mxu0 %v604
    %v677 = vpop.f32.mrb[0].mxu0
    %v678 = vadd.f32 0.0, %v677
    %v679 = vpop.f32.mrb[0].mxu0
    %680 = vdwg.mxu0
    %v681 = vmul.f32 %v592, %v416
    %v682 = vmul.f32 %v597, %v417
    %v683 = vmul.f32 %v673, %v418
    %v684 = vmul.f32 %v678, %v419
    %v686 = vsel %vm498, %v508, 0
    %688 = vmatprep.subr.mxu0 0.0
    %689 = vmatpush1.msra.mxu0 %v53
    %690 = vmatprep.subr.mxu0 0.0
    %691 = vmatpush1.msra.mxu0 %v54
    %692 = vmatprep.subr.mxu0 0.0
    %693 = vmatpush1.msra.mxu0 0.0
    %694 = vmatprep.subr.mxu0 0.0
    %695 = vmatpush1.msra.mxu0 0.0
    %696 = vmatprep.subr.mxu0 0.0
    %697 = vmatpush1.msra.mxu0 0.0
    %698 = vmatprep.subr.mxu0 0.0
    %699 = vmatpush1.msra.mxu0 0.0
    %700 = vmatprep.subr.mxu0 0.0
    %701 = vmatpush1.msra.mxu0 0.0
    %702 = vmatprep.subr.mxu0 0.0
    %703 = vmatpush1.msra.mxu0 0.0
    %704 = vmatprep.subr.mxu0 0.0
    %705 = vmatpush1.msra.mxu0 0.0
    %706 = vmatprep.subr.mxu0 0.0
    %707 = vmatpush1.msra.mxu0 0.0
    %708 = vmatprep.subr.mxu0 0.0
    %709 = vmatpush1.msra.mxu0 0.0
    %710 = vmatprep.subr.mxu0 0.0
    %711 = vmatpush1.msra.mxu0 0.0
    %712 = vmatprep.subr.mxu0 0.0
    %713 = vmatpush1.msra.mxu0 0.0
    %714 = vmatprep.subr.mxu0 0.0
    %715 = vmatpush1.msra.mxu0 0.0
    %716 = vmatprep.subr.mxu0 0.0
    %717 = vmatpush1.msra.mxu0 0.0
    %718 = vmatprep.subr.mxu0 0.0
    %719 = vmatpush1.msra.mxu0 0.0
    %720 = vmatprep.subr.mxu0 0.0
    %721 = vmatpush1.msra.mxu0 0.0
    %722 = vmatprep.subr.mxu0 0.0
    %723 = vmatpush1.msra.mxu0 0.0
    %724 = vmatprep.subr.mxu0 0.0
    %725 = vmatpush1.msra.mxu0 0.0
    %726 = vmatprep.subr.mxu0 0.0
    %727 = vmatpush1.msra.mxu0 0.0
    %728 = vmatprep.subr.mxu0 0.0
    %729 = vmatpush1.msra.mxu0 0.0
    %730 = vmatprep.subr.mxu0 0.0
    %731 = vmatpush1.msra.mxu0 0.0
    %732 = vmatprep.subr.mxu0 0.0
    %733 = vmatpush1.msra.mxu0 0.0
    %734 = vmatprep.subr.mxu0 0.0
    %735 = vmatpush1.msra.mxu0 0.0
    %736 = vmatprep.subr.mxu0 0.0
    %737 = vmatpush1.msra.mxu0 0.0
    %738 = vmatprep.subr.mxu0 0.0
    %739 = vmatpush1.msra.mxu0 0.0
    %740 = vmatprep.subr.mxu0 0.0
    %741 = vmatpush1.msra.mxu0 0.0
    %742 = vmatprep.subr.mxu0 0.0
    %743 = vmatpush1.msra.mxu0 0.0
    %744 = vmatprep.subr.mxu0 0.0
    %745 = vmatpush1.msra.mxu0 0.0
    %746 = vmatprep.subr.mxu0 0.0
    %747 = vmatpush1.msra.mxu0 0.0
    %748 = vmatprep.subr.mxu0 0.0
    %749 = vmatpush1.msra.mxu0 0.0
    %750 = vmatprep.subr.mxu0 0.0
    %751 = vmatpush1.msra.mxu0 0.0
    %752 = vmatprep.mubr.f32.mxu0 0.0
    %753 = vmatmul.mubr.f32.gmra.mrb[0].mxu0 %v686
    %v754 = vpop.f32.mrb[0].mxu0
    %v755 = vadd.f32 0.0, %v754
    %v756 = vpop.f32.mrb[0].mxu0
    %757 = vdwg.mxu0
    %v759 = vsel %vm498, %v510, 0
    %761 = vmatprep.subr.mxu0 0.0
    %762 = vmatpush1.msra.mxu0 %v55
    %763 = vmatprep.subr.mxu0 0.0
    %764 = vmatpush1.msra.mxu0 %v56
    %765 = vmatprep.subr.mxu0 0.0
    %766 = vmatpush1.msra.mxu0 0.0
    %767 = vmatprep.subr.mxu0 0.0
    %768 = vmatpush1.msra.mxu0 0.0
    %769 = vmatprep.subr.mxu0 0.0
    %770 = vmatpush1.msra.mxu0 0.0
    %771 = vmatprep.subr.mxu0 0.0
    %772 = vmatpush1.msra.mxu0 0.0
    %773 = vmatprep.subr.mxu0 0.0
    %774 = vmatpush1.msra.mxu0 0.0
    %775 = vmatprep.subr.mxu0 0.0
    %776 = vmatpush1.msra.mxu0 0.0
    %777 = vmatprep.subr.mxu0 0.0
    %778 = vmatpush1.msra.mxu0 0.0
    %779 = vmatprep.subr.mxu0 0.0
    %780 = vmatpush1.msra.mxu0 0.0
    %781 = vmatprep.subr.mxu0 0.0
    %782 = vmatpush1.msra.mxu0 0.0
    %783 = vmatprep.subr.mxu0 0.0
    %784 = vmatpush1.msra.mxu0 0.0
    %785 = vmatprep.subr.mxu0 0.0
    %786 = vmatpush1.msra.mxu0 0.0
    %787 = vmatprep.subr.mxu0 0.0
    %788 = vmatpush1.msra.mxu0 0.0
    %789 = vmatprep.subr.mxu0 0.0
    %790 = vmatpush1.msra.mxu0 0.0
    %791 = vmatprep.subr.mxu0 0.0
    %792 = vmatpush1.msra.mxu0 0.0
    %793 = vmatprep.subr.mxu0 0.0
    %794 = vmatpush1.msra.mxu0 0.0
    %795 = vmatprep.subr.mxu0 0.0
    %796 = vmatpush1.msra.mxu0 0.0
    %797 = vmatprep.subr.mxu0 0.0
    %798 = vmatpush1.msra.mxu0 0.0
    %799 = vmatprep.subr.mxu0 0.0
    %800 = vmatpush1.msra.mxu0 0.0
    %801 = vmatprep.subr.mxu0 0.0
    %802 = vmatpush1.msra.mxu0 0.0
    %803 = vmatprep.subr.mxu0 0.0
    %804 = vmatpush1.msra.mxu0 0.0
    %805 = vmatprep.subr.mxu0 0.0
    %806 = vmatpush1.msra.mxu0 0.0
    %807 = vmatprep.subr.mxu0 0.0
    %808 = vmatpush1.msra.mxu0 0.0
    %809 = vmatprep.subr.mxu0 0.0
    %810 = vmatpush1.msra.mxu0 0.0
    %811 = vmatprep.subr.mxu0 0.0
    %812 = vmatpush1.msra.mxu0 0.0
    %813 = vmatprep.subr.mxu0 0.0
    %814 = vmatpush1.msra.mxu0 0.0
    %815 = vmatprep.subr.mxu0 0.0
    %816 = vmatpush1.msra.mxu0 0.0
    %817 = vmatprep.subr.mxu0 0.0
    %818 = vmatpush1.msra.mxu0 0.0
    %819 = vmatprep.subr.mxu0 0.0
    %820 = vmatpush1.msra.mxu0 0.0
    %821 = vmatprep.subr.mxu0 0.0
    %822 = vmatpush1.msra.mxu0 0.0
    %823 = vmatprep.subr.mxu0 0.0
    %824 = vmatpush1.msra.mxu0 0.0
    %825 = vmatprep.mubr.f32.mxu0 0.0
    %826 = vmatmul.mubr.f32.gmra.mrb[0].mxu0 %v759
    %v827 = vpop.f32.mrb[0].mxu0
    %v828 = vadd.f32 0.0, %v827
    %v829 = vpop.f32.mrb[0].mxu0
    %830 = vdwg.mxu0
    %v831 = vmul.f32 %v755, %v517
    %v832 = vmul.f32 %v828, %v518
    %833 = vmatprep.subr.mxu0 0.0
    %834 = vmatpush1.msra.mxu0 %v831
    %835 = vmatprep.subr.mxu0 0.0
    %836 = vmatpush1.msra.mxu0 0.0
    %837 = vmatprep.subr.mxu0 0.0
    %838 = vmatpush1.msra.mxu0 0.0
    %839 = vmatprep.subr.mxu0 0.0
    %840 = vmatpush1.msra.mxu0 0.0
    %841 = vmatprep.subr.mxu0 0.0
    %842 = vmatpush1.msra.mxu0 0.0
    %843 = vmatprep.subr.mxu0 0.0
    %844 = vmatpush1.msra.mxu0 0.0
    %845 = vmatprep.subr.mxu0 0.0
    %846 = vmatpush1.msra.mxu0 0.0
    %847 = vmatprep.subr.mxu0 0.0
    %848 = vmatpush1.msra.mxu0 0.0
    %849 = vmatprep.subr.mxu0 0.0
    %850 = vmatpush1.msra.mxu0 0.0
    %851 = vmatprep.subr.mxu0 0.0
    %852 = vmatpush1.msra.mxu0 0.0
    %853 = vmatprep.subr.mxu0 0.0
    %854 = vmatpush1.msra.mxu0 0.0
    %855 = vmatprep.subr.mxu0 0.0
    %856 = vmatpush1.msra.mxu0 0.0
    %857 = vmatprep.subr.mxu0 0.0
    %858 = vmatpush1.msra.mxu0 0.0
    %859 = vmatprep.subr.mxu0 0.0
    %860 = vmatpush1.msra.mxu0 0.0
    %861 = vmatprep.subr.mxu0 0.0
    %862 = vmatpush1.msra.mxu0 0.0
    %863 = vmatprep.subr.mxu0 0.0
    %864 = vmatpush1.msra.mxu0 0.0
    %865 = vmatprep.subr.mxu0 0.0
    %866 = vmatpush1.msra.mxu0 0.0
    %867 = vmatprep.subr.mxu0 0.0
    %868 = vmatpush1.msra.mxu0 0.0
    %869 = vmatprep.subr.mxu0 0.0
    %870 = vmatpush1.msra.mxu0 0.0
    %871 = vmatprep.subr.mxu0 0.0
    %872 = vmatpush1.msra.mxu0 0.0
    %873 = vmatprep.subr.mxu0 0.0
    %874 = vmatpush1.msra.mxu0 0.0
    %875 = vmatprep.subr.mxu0 0.0
    %876 = vmatpush1.msra.mxu0 0.0
    %877 = vmatprep.subr.mxu0 0.0
    %878 = vmatpush1.msra.mxu0 0.0
    %879 = vmatprep.subr.mxu0 0.0
    %880 = vmatpush1.msra.mxu0 0.0
    %881 = vmatprep.subr.mxu0 0.0
    %882 = vmatpush1.msra.mxu0 0.0
    %883 = vmatprep.subr.mxu0 0.0
    %884 = vmatpush1.msra.mxu0 0.0
    %885 = vmatprep.subr.mxu0 0.0
    %886 = vmatpush1.msra.mxu0 0.0
    %887 = vmatprep.subr.mxu0 0.0
    %888 = vmatpush1.msra.mxu0 0.0
    %889 = vmatprep.subr.mxu0 0.0
    %890 = vmatpush1.msra.mxu0 0.0
    %891 = vmatprep.subr.mxu0 0.0
    %892 = vmatpush1.msra.mxu0 0.0
    %893 = vmatprep.subr.mxu0 0.0
    %894 = vmatpush1.msra.mxu0 0.0
    %895 = vmatprep.subr.mxu0 0.0
    %896 = vmatpush1.msra.mxu0 0.0
    %897 = vmatprep.mubr.f32.mxu0 0.0
    %898 = vmatmul.mubr.f32.gmra.mrb[0].mxu0 %v520
    %v899 = vpop.f32.mrb[0].mxu0
    %v900 = vadd.f32 0.0, %v899
    %v901 = vpop.f32.mrb[0].mxu0
    %902 = vmatprep.mubr.f32.mxu0 0.0
    %903 = vmatmul.mubr.f32.gmra.mrb[0].mxu0 %v523
    %v904 = vpop.f32.mrb[0].mxu0
    %v905 = vadd.f32 0.0, %v904
    %v906 = vpop.f32.mrb[0].mxu0
    %907 = vdwg.mxu0
    %908 = vmatprep.subr.mxu0 0.0
    %909 = vmatpush1.msra.mxu0 %v832
    %910 = vmatprep.subr.mxu0 0.0
    %911 = vmatpush1.msra.mxu0 0.0
    %912 = vmatprep.subr.mxu0 0.0
    %913 = vmatpush1.msra.mxu0 0.0
    %914 = vmatprep.subr.mxu0 0.0
    %915 = vmatpush1.msra.mxu0 0.0
    %916 = vmatprep.subr.mxu0 0.0
    %917 = vmatpush1.msra.mxu0 0.0
    %918 = vmatprep.subr.mxu0 0.0
    %919 = vmatpush1.msra.mxu0 0.0
    %920 = vmatprep.subr.mxu0 0.0
    %921 = vmatpush1.msra.mxu0 0.0
    %922 = vmatprep.subr.mxu0 0.0
    %923 = vmatpush1.msra.mxu0 0.0
    %924 = vmatprep.subr.mxu0 0.0
    %925 = vmatpush1.msra.mxu0 0.0
    %926 = vmatprep.subr.mxu0 0.0
    %927 = vmatpush1.msra.mxu0 0.0
    %928 = vmatprep.subr.mxu0 0.0
    %929 = vmatpush1.msra.mxu0 0.0
    %930 = vmatprep.subr.mxu0 0.0
    %931 = vmatpush1.msra.mxu0 0.0
    %932 = vmatprep.subr.mxu0 0.0
    %933 = vmatpush1.msra.mxu0 0.0
    %934 = vmatprep.subr.mxu0 0.0
    %935 = vmatpush1.msra.mxu0 0.0
    %936 = vmatprep.subr.mxu0 0.0
    %937 = vmatpush1.msra.mxu0 0.0
    %938 = vmatprep.subr.mxu0 0.0
    %939 = vmatpush1.msra.mxu0 0.0
    %940 = vmatprep.subr.mxu0 0.0
    %941 = vmatpush1.msra.mxu0 0.0
    %942 = vmatprep.subr.mxu0 0.0
    %943 = vmatpush1.msra.mxu0 0.0
    %944 = vmatprep.subr.mxu0 0.0
    %945 = vmatpush1.msra.mxu0 0.0
    %946 = vmatprep.subr.mxu0 0.0
    %947 = vmatpush1.msra.mxu0 0.0
    %948 = vmatprep.subr.mxu0 0.0
    %949 = vmatpush1.msra.mxu0 0.0
    %950 = vmatprep.subr.mxu0 0.0
    %951 = vmatpush1.msra.mxu0 0.0
    %952 = vmatprep.subr.mxu0 0.0
    %953 = vmatpush1.msra.mxu0 0.0
    %954 = vmatprep.subr.mxu0 0.0
    %955 = vmatpush1.msra.mxu0 0.0
    %956 = vmatprep.subr.mxu0 0.0
    %957 = vmatpush1.msra.mxu0 0.0
    %958 = vmatprep.subr.mxu0 0.0
    %959 = vmatpush1.msra.mxu0 0.0
    %960 = vmatprep.subr.mxu0 0.0
    %961 = vmatpush1.msra.mxu0 0.0
    %962 = vmatprep.subr.mxu0 0.0
    %963 = vmatpush1.msra.mxu0 0.0
    %964 = vmatprep.subr.mxu0 0.0
    %965 = vmatpush1.msra.mxu0 0.0
    %966 = vmatprep.subr.mxu0 0.0
    %967 = vmatpush1.msra.mxu0 0.0
    %968 = vmatprep.subr.mxu0 0.0
    %969 = vmatpush1.msra.mxu0 0.0
    %970 = vmatprep.subr.mxu0 0.0
    %971 = vmatpush1.msra.mxu0 0.0
    %972 = vmatprep.mubr.f32.mxu0 0.0
    %973 = vmatmul.mubr.f32.gmra.mrb[0].mxu0 %v601
    %v974 = vpop.f32.mrb[0].mxu0
    %v975 = vadd.f32 0.0, %v974
    %v976 = vpop.f32.mrb[0].mxu0
    %977 = vmatprep.mubr.f32.mxu0 0.0
    %978 = vmatmul.mubr.f32.gmra.mrb[0].mxu0 %v604
    %v979 = vpop.f32.mrb[0].mxu0
    %v980 = vadd.f32 0.0, %v979
    %v981 = vpop.f32.mrb[0].mxu0
    %982 = vdwg.mxu0
    %v983 = vmul.f32 %v900, %v416
    %v984 = vmul.f32 %v905, %v417
    %v985 = vmul.f32 %v975, %v418
    %v986 = vmul.f32 %v980, %v419
    %v987 = vmul.f32 %v53, %v681
    %v988 = vmul.f32 %v54, %v682
    %v989 = vmul.f32 %v55, %v683
    %v990 = vmul.f32 %v56, %v684
    %v991 = vmul.f32 %v53, %v983
    %v992 = vmul.f32 %v54, %v984
    %v993 = vmul.f32 %v55, %v985
    %v994 = vmul.f32 %v56, %v986
    %999 = vrot.lane.b32.xlu0 %v681, 32
    %v1000 = vpop.permute.xlu0 %999
    %1001 = vrot.lane.b32.xlu0 %v682, 32
    %v1002 = vpop.permute.xlu0 %1001
    %1003 = vrot.lane.b32.xlu0 %v683, 32
    %v1004 = vpop.permute.xlu0 %1003
    %1005 = vrot.lane.b32.xlu0 %v684, 32
    %v1006 = vpop.permute.xlu0 %1005
    %1015 = vrot.lane.b32.xlu0 %v987, 64
    %v1016 = vpop.permute.xlu0 %1015
    %1017 = vrot.lane.b32.xlu0 %v988, 64
    %v1018 = vpop.permute.xlu0 %1017
    %1019 = vrot.lane.b32.xlu0 %v989, 64
    %v1020 = vpop.permute.xlu0 %1019
    %1021 = vrot.lane.b32.xlu0 %v990, 64
    %v1022 = vpop.permute.xlu0 %1021
    %1031 = vrot.lane.b32.xlu0 %v991, 96
    %v1032 = vpop.permute.xlu0 %1031
    %1033 = vrot.lane.b32.xlu0 %v992, 96
    %v1034 = vpop.permute.xlu0 %1033
    %1035 = vrot.lane.b32.xlu0 %v993, 96
    %v1036 = vpop.permute.xlu0 %1035
    %1037 = vrot.lane.b32.xlu0 %v994, 96
    %v1038 = vpop.permute.xlu0 %1037
    %v1043 = vsel %vm75, %v53, %v1000
    %v1044 = vsel %vm75, %v54, %v1002
    %v1045 = vsel %vm75, %v55, %v1004
    %v1046 = vsel %vm75, %v56, %v1006
    %vm1047 = vcmask 523264
    %v1048 = vsel %vm1047, %v1043, %v1016
    %v1049 = vsel %vm1047, %v1044, %v1018
    %v1050 = vsel %vm1047, %v1045, %v1020
    %v1051 = vsel %vm1047, %v1046, %v1022
    %vm1052 = vcmask 785408
    %v1053 = vsel %vm1052, %v1048, %v1032
    %v1054 = vsel %vm1052, %v1049, %v1034
    %v1055 = vsel %vm1052, %v1050, %v1036
    %v1056 = vsel %vm1052, %v1051, %v1038
    %1057 = vst [vmem:[#allocation8] sm:$0xff] %v1053
    %1058 = vst [vmem:[#allocation8 + $0x8] sm:$0xff] %v1054
    %1059 = vst [vmem:[#allocation8 + $0x10] sm:$0xff] %v1055
    %1060 = vst [vmem:[#allocation8 + $0x18] sm:$0xff] %v1056
    // Predicated region
    $region34: #{tpu_custom_call.1} parent=1 // pred_check
      _
    $region35: #{tpu_custom_call.1} parent=1 // pred_check_branch
      %1062 = sbr.rel (0) target = $region37
    $region36: #{tpu_custom_call.1} parent=1 // pred_region
      %s1064 = ssub.s32 512, 512
      %1065 = vsyncadd [#allocation5], %s1064
      %s1066 = sshll.u32 [#allocation8], 4
      %s1067 = int_to_ptr.vmem [resolvable:$true] %s1066
      %1072 = dma.vmem_to_hbm [thread:$0]  %s1067, 512, %s6, [#allocation5], 128, 128, 8
    $region37: #{tpu_custom_call.1} parent=1 // pred_fallthru
      _
    // Predicated region
    $region38: #{tpu_custom_call.1} parent=1 // pred_check
      _
    $region39: #{tpu_custom_call.1} parent=1 // pred_check_branch
      %1074 = sbr.rel (0) target = $region41
    $region40: #{tpu_custom_call.1} parent=1 // pred_region
      %1075 = dma.done [#allocation5], 512
    $region41: #{tpu_custom_call.1} parent=1 // pred_fallthru
      _
    %1076 = vsyncpa [#allocation4], 1
    %1077 = vsyncpa [#allocation7], 1
    %1078 = vsyncpa [#allocation5], 1

</llo_original>
